<compile_context>
chip_gen: v7x
topology: tpu7x:2x2x1
jax: 0.10.0
libtpu: 0.0.40
codegen_flags: <defaults>
</compile_context>

<pallas_src>
import functools

import jax
import jax.numpy as jnp
from jax.experimental import pallas as pl
from jax.experimental.pallas import tpu as pltpu

_MIB = 1024 * 1024


def _round_up(n, m):
    return ((n + m - 1) // m) * m


def _sublane_granularity(dtype):
    itemsize = jnp.dtype(dtype).itemsize
    return {4: 8, 2: 16, 1: 32}.get(itemsize, 8)


def _vmem_capacity_bytes():
    try:
        return int(pltpu.get_tpu_info().vmem_capacity_bytes)
    except Exception:
        return 64 * _MIB  # conservative default (v7x per-TC VMEM)


# ------------------------------------------------------------------ kernels --

def _mlp_kernel_acc(x_ref, wgu_ref, wd_ref, o_ref, acc_ref, *, ti):
    """Accumulate down-proj partials in an f32 scratch (out dtype != f32)."""
    k = pl.program_id(1)

    @pl.when(k == 0)
    def _init():
        acc_ref[...] = jnp.zeros_like(acc_ref)

    x = x_ref[...]
    # Fused gate+up projection: one MXU push of the LHS, f32 accumulation.
    gu = jnp.dot(x, wgu_ref[...], preferred_element_type=jnp.float32)  # (tm, 2*ti)
    gate = gu[:, :ti]
    up = gu[:, ti:]
    # SiLU(gate) * up — elementwise in f32 (safe on v5e's f32-only VPU/EUP).
    h = (gate * jax.nn.sigmoid(gate)) * up
    acc_ref[...] += jnp.dot(h.astype(wd_ref.dtype), wd_ref[...],
                            preferred_element_type=jnp.float32)

    @pl.when(k == pl.num_programs(1) - 1)
    def _finalize():
        o_ref[...] = acc_ref[...].astype(o_ref.dtype)


def _mlp_kernel_noacc(x_ref, wgu_ref, wd_ref, o_ref, *, ti):
    """f32 output: accumulate straight into the resident output tile."""
    k = pl.program_id(1)

    x = x_ref[...]
    gu = jnp.dot(x, wgu_ref[...], preferred_element_type=jnp.float32)
    gate = gu[:, :ti]
    up = gu[:, ti:]
    h = (gate * jax.nn.sigmoid(gate)) * up
    partial = jnp.dot(h.astype(wd_ref.dtype), wd_ref[...],
                      preferred_element_type=jnp.float32)

    @pl.when(k == 0)
    def _first():
        o_ref[...] = partial

    @pl.when(k > 0)
    def _rest():
        o_ref[...] += partial


# ------------------------------------------------------------ tile selection --

def _select_ti(H, I, cbytes, vmem_cap, ti_req=None):
    if ti_req is not None:
        assert I % ti_req == 0, f"I={I} must be divisible by ti={ti_req}"
        return ti_req
    if I % 128 != 0 or I <= 1024:
        # Whole intermediate dim per step (block == full array dim satisfies
        # the lane-tiling rule even when I is not 128-aligned).
        return I
    # Double-buffered fused [H,2ti] + [ti,H] weight tiles kept under ~40% of
    # VMEM, leaving room for x/out/acc/intermediates and pipeline headroom.
    budget = int(0.4 * vmem_cap)
    for cand in (2048, 1024, 512, 256, 128):
        if I % cand == 0 and 6 * H * cand * cbytes <= budget:
            return cand
    for cand in (128, 256, 512, 1024, 2048):
        if I % cand == 0:
            return cand
    return I


def _select_tm(T, H, ti, cbytes, obytes, use_acc, vmem_cap, gran, tm_req=None):
    def working_set(tm):
        ws = (2 * tm * H * cbytes            # x tile (double-buffered)
              + 2 * H * (2 * ti) * cbytes    # fused gate/up weight tile
              + 2 * ti * H * cbytes          # down weight tile
              + 2 * tm * H * obytes          # output tile
              + tm * (2 * ti) * 4            # f32 gu intermediate
              + tm * ti * 4)                 # f32 h intermediate
        if use_acc:
            ws += tm * H * 4                 # f32 accumulator scratch
        return ws

    T_gran = _round_up(max(T, 1), gran)
    if tm_req is not None:
        tm = min(_round_up(tm_req, gran), T_gran)
        return tm, working_set(tm)

    cands = [c for c in (768, 512, 384, 256, 128, 64, 32, 16, 8) if c % gran == 0]
    cands = [min(c, T_gran) for c in cands]
    seen = set()
    cands = [c for c in cands if not (c in seen or seen.add(c))]

    budget = int(0.8 * vmem_cap)
    for tm in cands:
        if working_set(tm) <= budget:
            return tm, working_set(tm)
    tm = cands[-1]
    return tm, working_set(tm)


# ------------------------------------------------------------------- wrapper --

def make_creek_mlp(w_gate, w_up, w_down, *, compute_dtype=jnp.bfloat16,
                   tm=None, ti=None, out_dtype=None):
    """Prepare creekMLP weights ONCE and return a jitted forward closure.

    w_gate, w_up: [H, I]  (transpose of torch gate_proj / up_proj .weight)
    w_down:       [I, H]  (transpose of torch down_proj.weight)
    """
    H, I = w_gate.shape
    assert w_up.shape == (H, I) and w_down.shape == (I, H)

    cdtype = jnp.dtype(compute_dtype)
    cbytes = cdtype.itemsize
    vmem_cap = _vmem_capacity_bytes()

    ti_sel = _select_ti(H, I, cbytes, vmem_cap, ti_req=ti)
    nk = I // ti_sel

    # Fuse gate/up into one [H, 2I] matrix laid out so each k-tile is a
    # contiguous [gate_k | up_k] block of width 2*ti.  Built ONCE here (weight
    # load time), never per forward call.
    wgu = jnp.concatenate(
        [w_gate.reshape(H, nk, 1, ti_sel), w_up.reshape(H, nk, 1, ti_sel)],
        axis=2).reshape(H, 2 * I).astype(cdtype)
    wd = w_down.astype(cdtype)

    gran = _sublane_granularity(cdtype)

    def forward(x):
        B, S, H_in = x.shape
        assert H_in == H
        odt = jnp.dtype(out_dtype) if out_dtype is not None else jnp.dtype(x.dtype)
        obytes = odt.itemsize
        use_acc = odt != jnp.dtype(jnp.float32)

        T = B * S
        tm_eff, ws = _select_tm(T, H, ti_sel, cbytes, obytes, use_acc,
                                vmem_cap, gran, tm_req=tm)
        T_pad = _round_up(T, tm_eff)
        n_tok_tiles = T_pad // tm_eff

        x2d = x.reshape(T, H).astype(cdtype)
        if T_pad != T:
            x2d = jnp.pad(x2d, ((0, T_pad - T), (0, 0)))

        # VMEM limit: accurate working set + margin, clamped below physical.
        vmem_limit = min(int(1.15 * ws) + 2 * _MIB, vmem_cap - 4 * _MIB)
        vmem_limit = max(vmem_limit, 16 * _MIB)
        vmem_limit = min(vmem_limit, vmem_cap - 4 * _MIB)

        cost = pl.CostEstimate(
            flops=int(6 * T_pad * H * I),
            transcendentals=int(T_pad * I),
            bytes_accessed=int(T_pad * H * (cbytes + obytes)
                               + n_tok_tiles * 3 * H * I * cbytes),
        )

        if use_acc:
            kernel = functools.partial(_mlp_kernel_acc, ti=ti_sel)
            scratch = [pltpu.VMEM((tm_eff, H), jnp.float32)]
        else:
            kernel = functools.partial(_mlp_kernel_noacc, ti=ti_sel)
            scratch = []

        out = pl.pallas_call(
            kernel,
            out_shape=jax.ShapeDtypeStruct((T_pad, H), odt),
            grid_spec=pltpu.PrefetchScalarGridSpec(
                num_scalar_prefetch=0,
                grid=(n_tok_tiles, nk),
                in_specs=[
                    pl.BlockSpec((tm_eff, H), lambda i, k: (i, 0)),      # x tile
                    pl.BlockSpec((H, 2 * ti_sel), lambda i, k: (0, k)),  # gate|up tile
                    pl.BlockSpec((ti_sel, H), lambda i, k: (k, 0)),      # down tile
                ],
                out_specs=pl.BlockSpec((tm_eff, H), lambda i, k: (i, 0)),
                scratch_shapes=scratch,
            ),
            compiler_params=pltpu.CompilerParams(
                dimension_semantics=("parallel", "arbitrary"),
                vmem_limit_bytes=int(vmem_limit),
            ),
            cost_estimate=cost,
        )(x2d, wgu, wd)

        return out[:T].reshape(B, S, H)

    return jax.jit(forward)


def _reference(x, w_gate, w_up, w_down):
    gate = jnp.einsum("bsh,hi->bsi", x, w_gate)
    up = jnp.einsum("bsh,hi->bsi", x, w_up)
    h = jax.nn.silu(gate) * up
    return jnp.einsum("bsi,ih->bsh", h, w_down)


if __name__ == "__main__":
    # Small config consistent with the module: hidden_size=32, intermediate_size=64.
    B, S, H, I = 2, 8, 32, 64

    key = jax.random.PRNGKey(0)
    kx, kg, ku, kd = jax.random.split(key, 4)

    x = jax.random.normal(kx, (B, S, H), dtype=jnp.float32)
    # Deterministic scaled init; stored as [in, out] (transpose of torch .weight).
    w_gate = jax.random.normal(kg, (H, I), dtype=jnp.float32) * (1.0 / H) ** 0.5
    w_up = jax.random.normal(ku, (H, I), dtype=jnp.float32) * (1.0 / H) ** 0.5
    w_down = jax.random.normal(kd, (I, H), dtype=jnp.float32) * (1.0 / I) ** 0.5

    ref = _reference(x, w_gate, w_up, w_down)

    # Explicit f32 compute path (tight tolerance).
    mlp_f32 = make_creek_mlp(w_gate, w_up, w_down, compute_dtype=jnp.float32)
    out = jax.block_until_ready(mlp_f32(x))
    assert out.shape == (B, S, H)
    assert jnp.allclose(out, ref, atol=1e-4, rtol=1e-4), "f32 mismatch vs reference"

    # Default path: bf16 MXU matmuls with f32 accumulation (looser tolerance).
    mlp_bf16 = make_creek_mlp(w_gate, w_up, w_down)
    out_bf16 = jax.block_until_ready(mlp_bf16(x))
    assert out_bf16.shape == (B, S, H)
    assert jnp.allclose(out_bf16.astype(jnp.float32), ref, atol=5e-2, rtol=5e-2), \
        "bf16 mismatch vs reference"

    print("KERNEL_OK")
</pallas_src>

<mosaic_0001>
module attributes {stable_mosaic.version = 11 : i64} {
  func.func @_mlp_kernel_noacc(%arg0: i32, %arg1: i32, %arg2: memref<16x32xf32, #tpu.memory_space<vmem>>, %arg3: memref<32x128xf32, #tpu.memory_space<vmem>>, %arg4: memref<64x32xf32, #tpu.memory_space<vmem>>, %arg5: memref<16x32xf32, #tpu.memory_space<vmem>>) attributes {dimension_semantics = [#tpu.dimension_semantics<parallel>, #tpu.dimension_semantics<arbitrary>], iteration_bounds = array<i64: 1, 1>, scalar_prefetch = 0 : i64, scratch_operands = 0 : i64, tpu.core_type = #tpu.core_type<tc>, window_params = [{transform_indices = @transform_0, window_bounds = array<i64: 16, 32>}, {transform_indices = @transform_1, window_bounds = array<i64: 32, 128>}, {transform_indices = @transform_2, window_bounds = array<i64: 64, 32>}, {transform_indices = @transform_3, window_bounds = array<i64: 16, 32>}]} {
    %c0 = arith.constant 0 : index
    %c0_0 = arith.constant 0 : index
    %0 = vector.load %arg2[%c0, %c0_0] : memref<16x32xf32, #tpu.memory_space<vmem>>, vector<16x32xf32>
    %c0_1 = arith.constant 0 : index
    %c0_2 = arith.constant 0 : index
    %1 = vector.load %arg3[%c0_1, %c0_2] : memref<32x128xf32, #tpu.memory_space<vmem>>, vector<32x128xf32>
    %cst = arith.constant dense<0.000000e+00> : vector<16x128xf32>
    %2 = tpu.matmul %0, %1, %cst {dimension_numbers = #tpu.dot_dimension_numbers<[1], [0], [0], [1], [0, 0, 1, 1], [], []>} : vector<16x32xf32>, vector<32x128xf32>, vector<16x128xf32> -> vector<16x128xf32>
    %3 = vector.extract_strided_slice %2 {offsets = [0, 0], sizes = [16, 64], strides = [1, 1]} : vector<16x128xf32> to vector<16x64xf32>
    %4 = vector.extract_strided_slice %2 {offsets = [0, 64], sizes = [16, 64], strides = [1, 1]} : vector<16x128xf32> to vector<16x64xf32>
    %5 = arith.negf %3 : vector<16x64xf32>
    %6 = math.exp %5 : vector<16x64xf32>
    %cst_3 = arith.constant 1.000000e+00 : f32
    %7 = vector.broadcast %cst_3 : f32 to vector<16x64xf32>
    %8 = arith.addf %7, %6 : vector<16x64xf32>
    %9 = arith.divf %7, %8 : vector<16x64xf32>
    %10 = arith.mulf %3, %9 : vector<16x64xf32>
    %11 = arith.mulf %10, %4 : vector<16x64xf32>
    %c0_4 = arith.constant 0 : index
    %c0_5 = arith.constant 0 : index
    %12 = vector.load %arg4[%c0_4, %c0_5] : memref<64x32xf32, #tpu.memory_space<vmem>>, vector<64x32xf32>
    %cst_6 = arith.constant dense<0.000000e+00> : vector<16x32xf32>
    %13 = tpu.matmul %11, %12, %cst_6 {dimension_numbers = #tpu.dot_dimension_numbers<[1], [0], [0], [1], [0, 0, 1, 1], [], []>} : vector<16x64xf32>, vector<64x32xf32>, vector<16x32xf32> -> vector<16x32xf32>
    %c0_i32 = arith.constant 0 : i32
    %14 = arith.cmpi eq, %arg1, %c0_i32 : i32
    %15 = arith.extui %14 : i1 to i32
    %c0_i32_7 = arith.constant 0 : i32
    %16 = arith.cmpi ne, %15, %c0_i32_7 : i32
    scf.if %16 {
      %c0_10 = arith.constant 0 : index
      %c0_11 = arith.constant 0 : index
      %20 = vector.load %arg5[%c0_10, %c0_11] : memref<16x32xf32, #tpu.memory_space<vmem>>, vector<16x32xf32>
      tpu.vector_store %arg5[%c0_10, %c0_11], %13 {strides = array<i32>} : memref<16x32xf32, #tpu.memory_space<vmem>>, vector<16x32xf32>,
    } else {
    }
    %c0_i32_8 = arith.constant 0 : i32
    %17 = arith.cmpi sgt, %arg1, %c0_i32_8 : i32
    %18 = arith.extui %17 : i1 to i32
    %c0_i32_9 = arith.constant 0 : i32
    %19 = arith.cmpi ne, %18, %c0_i32_9 : i32
    scf.if %19 {
      %c0_10 = arith.constant 0 : index
      %c0_11 = arith.constant 0 : index
      %20 = vector.load %arg5[%c0_10, %c0_11] : memref<16x32xf32, #tpu.memory_space<vmem>>, vector<16x32xf32>
      %21 = arith.addf %20, %13 : vector<16x32xf32>
      %c0_12 = arith.constant 0 : index
      %c0_13 = arith.constant 0 : index
      %22 = vector.load %arg5[%c0_12, %c0_13] : memref<16x32xf32, #tpu.memory_space<vmem>>, vector<16x32xf32>
      tpu.vector_store %arg5[%c0_12, %c0_13], %21 {strides = array<i32>} : memref<16x32xf32, #tpu.memory_space<vmem>>, vector<16x32xf32>,
    } else {
    }
    return
  }
  func.func @transform_0(%arg0: i32, %arg1: i32) -> (i32, i32) {
    %c0_i32 = arith.constant 0 : i32
    %c0_i32_0 = arith.constant 0 : i32
    return %arg0, %c0_i32 : i32, i32
  }
  func.func @transform_1(%arg0: i32, %arg1: i32) -> (i32, i32) {
    %c0_i32 = arith.constant 0 : i32
    %c0_i32_0 = arith.constant 0 : i32
    return %c0_i32, %arg1 : i32, i32
  }
  func.func @transform_2(%arg0: i32, %arg1: i32) -> (i32, i32) {
    %c0_i32 = arith.constant 0 : i32
    %c0_i32_0 = arith.constant 0 : i32
    return %arg1, %c0_i32 : i32, i32
  }
  func.func @transform_3(%arg0: i32, %arg1: i32) -> (i32, i32) {
    %c0_i32 = arith.constant 0 : i32
    %c0_i32_0 = arith.constant 0 : i32
    return %arg0, %c0_i32 : i32, i32
  }
}

</mosaic_0001>

<llo_original>
// kernel: forward.1
$region0: #{forward.1}
  #allocation0 [shape = 'u32[]', space=smem, size = 0x4, offset = 0x4, fixed_abs, tag = 'smem constant byte address 0x4 - core index']
  #allocation1 [shape = 'u32[144,128]{1,0:T(1,128)}', space=vmem, size = 0x12000, scoped, tag = 'internal scratch']
  %s0 = inlined_call_operand.hbm [shape: f32[16,32], index: 0, kind: input, shape index: {}]
  %s1 = inlined_call_operand.hbm [shape: f32[32,128], index: 1, kind: input, shape index: {}]
  %s2 = inlined_call_operand.hbm [shape: f32[64,32], index: 2, kind: input, shape index: {}]
  %s3 = inlined_call_operand.hbm [shape: f32[16,32], index: 3, kind: output, shape index: {}]
  %s4 = sld [smem:[#allocation0]]
  $region42: #{forward.1} parent=0
    _
  %s6 = ssub.s32 1, %s4
  %s7 = scalar_select 0, %s6, %s4
  $region1: #{forward.1} parent=0
    #allocation2 [shape = 'u8[8192]{0}', space=vmem, size = 0x2000, scoped, tag = 'input window, operand 0, single buffered']
    #allocation3 [shape = 's32[1]{0}', space=sflag, size = 0x4, scoped, tag = 'scoped memory for forward.1']
    #allocation4 [shape = 's32[1]{0}', space=sflag, size = 0x4, scoped, tag = 'scoped memory for forward.1']
    #allocation5 [shape = 'u8[16384]{0}', space=vmem, size = 0x4000, scoped, tag = 'input window, operand 1, single buffered']
    #allocation6 [shape = 's32[1]{0}', space=sflag, size = 0x4, scoped, tag = 'scoped memory for forward.1']
    #allocation7 [shape = 'u8[32768]{0}', space=vmem, size = 0x8000, scoped, tag = 'input window, operand 2, single buffered']
    #allocation8 [shape = 'u8[8192]{0}', space=vmem, size = 0x2000, scoped, tag = 'output window, operand 0, single buffered']
    %8 = vsyncpa [#allocation3], 0
    %9 = vsyncpa [#allocation6], 0
    %10 = vsyncpa [#allocation4], 0
    // Predicated region
    $region2: #{forward.1} parent=1 // pred_check
      _
    $region3: #{forward.1} parent=1 // pred_check_branch
      %12 = sbr.rel (0) target = $region5
    $region4: #{forward.1} parent=1 // pred_region
      %s14 = ssub.s32 256, 256
      %15 = vsyncadd [#allocation3], %s14
      %s16 = sshll.u32 [#allocation2], 4
      %s17 = int_to_ptr.vmem [resolvable:$true] %s16
      %22 = dma.hbm_to_vmem [thread:$0]  %s0, 256, %s17, [#allocation3], 128, 128, 8
    $region5: #{forward.1} parent=1 // pred_fallthru
      _
    // Predicated region
    $region6: #{forward.1} parent=1 // pred_check
      _
    $region7: #{forward.1} parent=1 // pred_check_branch
      %24 = sbr.rel (0) target = $region9
    $region8: #{forward.1} parent=1 // pred_region
      %s26 = ssub.s32 512, 512
      %27 = vsyncadd [#allocation6], %s26
      %s28 = sshll.u32 [#allocation5], 4
      %s29 = int_to_ptr.vmem [resolvable:$true] %s28
      %34 = dma.hbm_to_vmem [thread:$0]  %s1, 512, %s29, [#allocation6], 128, 128, 8
    $region9: #{forward.1} parent=1 // pred_fallthru
      _
    // Predicated region
    $region10: #{forward.1} parent=1 // pred_check
      _
    $region11: #{forward.1} parent=1 // pred_check_branch
      %36 = sbr.rel (0) target = $region13
    $region12: #{forward.1} parent=1 // pred_region
      %s38 = ssub.s32 1024, 1024
      %39 = vsyncadd [#allocation6], %s38
      %s40 = sshll.u32 [#allocation7], 4
      %s41 = int_to_ptr.vmem [resolvable:$true] %s40
      %46 = dma.hbm_to_vmem [thread:$0]  %s2, 1024, %s41, [#allocation6], 128, 128, 8
    $region13: #{forward.1} parent=1 // pred_fallthru
      _
    // Predicated region
    $region14: #{forward.1} parent=1 // pred_check
      _
    $region15: #{forward.1} parent=1 // pred_check_branch
      %48 = sbr.rel (0) target = $region17
    $region16: #{forward.1} parent=1 // pred_region
      %49 = dma.done [#allocation3], 256
    $region17: #{forward.1} parent=1 // pred_fallthru
      _
    // Predicated region
    $region18: #{forward.1} parent=1 // pred_check
      _
    $region19: #{forward.1} parent=1 // pred_check_branch
      %51 = sbr.rel (0) target = $region21
    $region20: #{forward.1} parent=1 // pred_region
      %52 = dma.done [#allocation6], 512
    $region21: #{forward.1} parent=1 // pred_fallthru
      _
    // Predicated region
    $region22: #{forward.1} parent=1 // pred_check
      _
    $region23: #{forward.1} parent=1 // pred_check_branch
      %54 = sbr.rel (0) target = $region25
    $region24: #{forward.1} parent=1 // pred_region
      %55 = dma.done [#allocation6], 1024
    $region25: #{forward.1} parent=1 // pred_fallthru
      _
    %v56 = vld [vmem:[#allocation2] sm:$0xff]
    %v57 = vld [vmem:[#allocation2 + $0x8] sm:$0xff]
    %v58 = vld [vmem:[#allocation5] sm:$0xff]
    %v59 = vld [vmem:[#allocation5 + $0x8] sm:$0xff]
    %v60 = vld [vmem:[#allocation5 + $0x10] sm:$0xff]
    %v61 = vld [vmem:[#allocation5 + $0x18] sm:$0xff]
    %vm62 = vcmask 261120
    %v64 = vsel %vm62, %v56, 0
    %v67 = vsel %vm62, %v57, 0
    %69 = vmatprep.subr.mxu0 0.0
    %70 = vmatpush1.msra.mxu0 %v58
    %71 = vmatprep.subr.mxu0 0.0
    %72 = vmatpush1.msra.mxu0 %v59
    %73 = vmatprep.subr.mxu0 0.0
    %74 = vmatpush1.msra.mxu0 %v60
    %75 = vmatprep.subr.mxu0 0.0
    %76 = vmatpush1.msra.mxu0 %v61
    %77 = vmatprep.subr.mxu0 0.0
    %78 = vmatpush1.msra.mxu0 0.0
    %79 = vmatprep.subr.mxu0 0.0
    %80 = vmatpush1.msra.mxu0 0.0
    %81 = vmatprep.subr.mxu0 0.0
    %82 = vmatpush1.msra.mxu0 0.0
    %83 = vmatprep.subr.mxu0 0.0
    %84 = vmatpush1.msra.mxu0 0.0
    %85 = vmatprep.subr.mxu0 0.0
    %86 = vmatpush1.msra.mxu0 0.0
    %87 = vmatprep.subr.mxu0 0.0
    %88 = vmatpush1.msra.mxu0 0.0
    %89 = vmatprep.subr.mxu0 0.0
    %90 = vmatpush1.msra.mxu0 0.0
    %91 = vmatprep.subr.mxu0 0.0
    %92 = vmatpush1.msra.mxu0 0.0
    %93 = vmatprep.subr.mxu0 0.0
    %94 = vmatpush1.msra.mxu0 0.0
    %95 = vmatprep.subr.mxu0 0.0
    %96 = vmatpush1.msra.mxu0 0.0
    %97 = vmatprep.subr.mxu0 0.0
    %98 = vmatpush1.msra.mxu0 0.0
    %99 = vmatprep.subr.mxu0 0.0
    %100 = vmatpush1.msra.mxu0 0.0
    %101 = vmatprep.subr.mxu0 0.0
    %102 = vmatpush1.msra.mxu0 0.0
    %103 = vmatprep.subr.mxu0 0.0
    %104 = vmatpush1.msra.mxu0 0.0
    %105 = vmatprep.subr.mxu0 0.0
    %106 = vmatpush1.msra.mxu0 0.0
    %107 = vmatprep.subr.mxu0 0.0
    %108 = vmatpush1.msra.mxu0 0.0
    %109 = vmatprep.subr.mxu0 0.0
    %110 = vmatpush1.msra.mxu0 0.0
    %111 = vmatprep.subr.mxu0 0.0
    %112 = vmatpush1.msra.mxu0 0.0
    %113 = vmatprep.subr.mxu0 0.0
    %114 = vmatpush1.msra.mxu0 0.0
    %115 = vmatprep.subr.mxu0 0.0
    %116 = vmatpush1.msra.mxu0 0.0
    %117 = vmatprep.subr.mxu0 0.0
    %118 = vmatpush1.msra.mxu0 0.0
    %119 = vmatprep.subr.mxu0 0.0
    %120 = vmatpush1.msra.mxu0 0.0
    %121 = vmatprep.subr.mxu0 0.0
    %122 = vmatpush1.msra.mxu0 0.0
    %123 = vmatprep.subr.mxu0 0.0
    %124 = vmatpush1.msra.mxu0 0.0
    %125 = vmatprep.subr.mxu0 0.0
    %126 = vmatpush1.msra.mxu0 0.0
    %127 = vmatprep.subr.mxu0 0.0
    %128 = vmatpush1.msra.mxu0 0.0
    %129 = vmatprep.subr.mxu0 0.0
    %130 = vmatpush1.msra.mxu0 0.0
    %131 = vmatprep.subr.mxu0 0.0
    %132 = vmatpush1.msra.mxu0 0.0
    %133 = vmatprep.mubr.f32.mxu0 0.0
    %134 = vmatmul.mubr.f32.gmra.mrb[0].mxu0 %v64
    %v135 = vpop.f32.mrb[0].mxu0
    %v136 = vadd.f32 0.0, %v135
    %v137 = vpop.f32.mrb[0].mxu0
    %138 = vmatprep.mubr.f32.mxu0 0.0
    %139 = vmatmul.mubr.f32.gmra.mrb[0].mxu0 %v67
    %v140 = vpop.f32.mrb[0].mxu0
    %v141 = vadd.f32 0.0, %v140
    %v142 = vpop.f32.mrb[0].mxu0
    %143 = vdwg.mxu0
    %v144 = vxor.u32 %v136, 2147483648
    %v145 = vxor.u32 %v141, 2147483648
    %v146 = vmul.f32 %v144, 1.442695
    %v147 = vpow.pop %v146
    %v148 = vmul.f32 %v145, 1.442695
    %v149 = vpow.pop %v148
    %v150 = vadd.f32 %v147, 1.0
    %v151 = vadd.f32 %v149, 1.0
    %v152 = vrcp.pop %v150
    %v153 = vmul.f32 1.0, %v152
    %v154 = vrcp.pop %v151
    %v155 = vmul.f32 1.0, %v154
    %v156 = vmul.f32 %v136, %v153
    %v157 = vmul.f32 %v141, %v155
    %160 = vrot.lane.b32.xlu0 %v136, 64
    %v161 = vpop.permute.xlu0 %160
    %162 = vrot.lane.b32.xlu0 %v141, 64
    %v163 = vpop.permute.xlu0 %162
    %v166 = vmul.f32 %v156, %v161
    %v167 = vmul.f32 %v157, %v163
    %v168 = vld [vmem:[#allocation7] sm:$0xff]
    %v169 = vld [vmem:[#allocation7 + $0x8] sm:$0xff]
    %v170 = vld [vmem:[#allocation7 + $0x10] sm:$0xff]
    %v171 = vld [vmem:[#allocation7 + $0x18] sm:$0xff]
    %v172 = vld [vmem:[#allocation7 + $0x20] sm:$0xff]
    %v173 = vld [vmem:[#allocation7 + $0x28] sm:$0xff]
    %v174 = vld [vmem:[#allocation7 + $0x30] sm:$0xff]
    %v175 = vld [vmem:[#allocation7 + $0x38] sm:$0xff]
    %vm176 = vcmask 523264
    %v178 = vsel %vm176, %v166, 0
    %v181 = vsel %vm176, %v167, 0
    %183 = vmatprep.subr.mxu0 0.0
    %184 = vmatpush1.msra.mxu0 %v168
    %185 = vmatprep.subr.mxu0 0.0
    %186 = vmatpush1.msra.mxu0 %v169
    %187 = vmatprep.subr.mxu0 0.0
    %188 = vmatpush1.msra.mxu0 %v170
    %189 = vmatprep.subr.mxu0 0.0
    %190 = vmatpush1.msra.mxu0 %v171
    %191 = vmatprep.subr.mxu0 0.0
    %192 = vmatpush1.msra.mxu0 %v172
    %193 = vmatprep.subr.mxu0 0.0
    %194 = vmatpush1.msra.mxu0 %v173
    %195 = vmatprep.subr.mxu0 0.0
    %196 = vmatpush1.msra.mxu0 %v174
    %197 = vmatprep.subr.mxu0 0.0
    %198 = vmatpush1.msra.mxu0 %v175
    %199 = vmatprep.subr.mxu0 0.0
    %200 = vmatpush1.msra.mxu0 0.0
    %201 = vmatprep.subr.mxu0 0.0
    %202 = vmatpush1.msra.mxu0 0.0
    %203 = vmatprep.subr.mxu0 0.0
    %204 = vmatpush1.msra.mxu0 0.0
    %205 = vmatprep.subr.mxu0 0.0
    %206 = vmatpush1.msra.mxu0 0.0
    %207 = vmatprep.subr.mxu0 0.0
    %208 = vmatpush1.msra.mxu0 0.0
    %209 = vmatprep.subr.mxu0 0.0
    %210 = vmatpush1.msra.mxu0 0.0
    %211 = vmatprep.subr.mxu0 0.0
    %212 = vmatpush1.msra.mxu0 0.0
    %213 = vmatprep.subr.mxu0 0.0
    %214 = vmatpush1.msra.mxu0 0.0
    %215 = vmatprep.subr.mxu0 0.0
    %216 = vmatpush1.msra.mxu0 0.0
    %217 = vmatprep.subr.mxu0 0.0
    %218 = vmatpush1.msra.mxu0 0.0
    %219 = vmatprep.subr.mxu0 0.0
    %220 = vmatpush1.msra.mxu0 0.0
    %221 = vmatprep.subr.mxu0 0.0
    %222 = vmatpush1.msra.mxu0 0.0
    %223 = vmatprep.subr.mxu0 0.0
    %224 = vmatpush1.msra.mxu0 0.0
    %225 = vmatprep.subr.mxu0 0.0
    %226 = vmatpush1.msra.mxu0 0.0
    %227 = vmatprep.subr.mxu0 0.0
    %228 = vmatpush1.msra.mxu0 0.0
    %229 = vmatprep.subr.mxu0 0.0
    %230 = vmatpush1.msra.mxu0 0.0
    %231 = vmatprep.subr.mxu0 0.0
    %232 = vmatpush1.msra.mxu0 0.0
    %233 = vmatprep.subr.mxu0 0.0
    %234 = vmatpush1.msra.mxu0 0.0
    %235 = vmatprep.subr.mxu0 0.0
    %236 = vmatpush1.msra.mxu0 0.0
    %237 = vmatprep.subr.mxu0 0.0
    %238 = vmatpush1.msra.mxu0 0.0
    %239 = vmatprep.subr.mxu0 0.0
    %240 = vmatpush1.msra.mxu0 0.0
    %241 = vmatprep.subr.mxu0 0.0
    %242 = vmatpush1.msra.mxu0 0.0
    %243 = vmatprep.subr.mxu0 0.0
    %244 = vmatpush1.msra.mxu0 0.0
    %245 = vmatprep.subr.mxu0 0.0
    %246 = vmatpush1.msra.mxu0 0.0
    %247 = vmatprep.mubr.f32.mxu0 0.0
    %248 = vmatmul.mubr.f32.gmra.mrb[0].mxu0 %v178
    %v249 = vpop.f32.mrb[0].mxu0
    %v250 = vadd.f32 0.0, %v249
    %v251 = vpop.f32.mrb[0].mxu0
    %252 = vmatprep.mubr.f32.mxu0 0.0
    %253 = vmatmul.mubr.f32.gmra.mrb[0].mxu0 %v181
    %v254 = vpop.f32.mrb[0].mxu0
    %v255 = vadd.f32 0.0, %v254
    %v256 = vpop.f32.mrb[0].mxu0
    %257 = vdwg.mxu0
    %p258 = scmp.eq.s32.totalorder 0, 0
    // Predicated region
    $region26: #{forward.1} parent=1 // pred_check
      %p259 = pneg %p258
    $region27: #{forward.1} parent=1 // pred_check_branch
      %261 = sbr.rel (%p259) target = $region29
    $region28: #{forward.1} parent=1 // pred_region
      %262 = vst.msk [vmem:[#allocation8] sm:$0xff] %vm62, %v250
      %263 = vst.msk [vmem:[#allocation8 + $0x8] sm:$0xff] %vm62, %v255
    $region29: #{forward.1} parent=1 // pred_fallthru
      _
    %p264 = scmp.gt.s32.totalorder 0, 0
    // Predicated region
    $region30: #{forward.1} parent=1 // pred_check
      %p265 = pneg %p264
    $region31: #{forward.1} parent=1 // pred_check_branch
      %267 = sbr.rel (%p265) target = $region33
    $region32: #{forward.1} parent=1 // pred_region
      %v268 = vld [vmem:[#allocation8] sm:$0xff]
      %v269 = vld [vmem:[#allocation8 + $0x8] sm:$0xff]
      %v270 = vadd.f32 %v268, %v250
      %v271 = vadd.f32 %v269, %v255
      %272 = vst.msk [vmem:[#allocation8] sm:$0xff] %vm62, %v270
      %273 = vst.msk [vmem:[#allocation8 + $0x8] sm:$0xff] %vm62, %v271
    $region33: #{forward.1} parent=1 // pred_fallthru
      _
    // Predicated region
    $region34: #{forward.1} parent=1 // pred_check
      _
    $region35: #{forward.1} parent=1 // pred_check_branch
      %275 = sbr.rel (0) target = $region37
    $region36: #{forward.1} parent=1 // pred_region
      %s277 = ssub.s32 256, 256
      %278 = vsyncadd [#allocation4], %s277
      %s279 = sshll.u32 [#allocation8], 4
      %s280 = int_to_ptr.vmem [resolvable:$true] %s279
      %285 = dma.vmem_to_hbm [thread:$0]  %s280, 256, %s3, [#allocation4], 128, 128, 8
    $region37: #{forward.1} parent=1 // pred_fallthru
      _
    // Predicated region
    $region38: #{forward.1} parent=1 // pred_check
      _
    $region39: #{forward.1} parent=1 // pred_check_branch
      %287 = sbr.rel (0) target = $region41
    $region40: #{forward.1} parent=1 // pred_region
      %288 = dma.done [#allocation4], 256
    $region41: #{forward.1} parent=1 // pred_fallthru
      _
    %289 = vsyncpa [#allocation3], 1
    %290 = vsyncpa [#allocation6], 1
    %291 = vsyncpa [#allocation4], 1

</llo_original>
